<compile_context>
chip_gen: v5e
topology: v5e:2x2
jax: 0.10.0
libtpu: 0.0.40
codegen_flags: <defaults>
</compile_context>

<pallas_src>
import functools

import jax
import jax.numpy as jnp
from jax.experimental import pallas as pl
from jax.experimental.pallas import tpu as pltpu


LATENT_PAD = 128  # lane-aligned padding of the 2-d latent (zeros; output-identical)


def _build_op_sequence(hls):
    """Static description of the encoder+decoder layer stack."""
    ops = []
    # encoder: block(in, hls[0]), block(hls[i], hls[i+1]) ..., Linear(hls[-1], 2)
    for _ in range(len(hls)):
        ops += ["linear", "ln", "lrelu"]
    ops += ["linear"]
    # decoder: block(2, hls[-1]), ..., Linear(hls[0], in), Softmax
    for _ in range(len(hls)):
        ops += ["linear", "ln", "lrelu"]
    ops += ["linear", "softmax"]
    return tuple(ops)


def _layer_dims(in_channel, hls):
    """Per-Linear (fan_in_logical, fan_out_logical, in_padded, out_padded) and
    LayerNorm widths, in forward order.  Only the 2-wide latent pair is padded."""
    lin, ln = [], []
    prev = in_channel
    for h in hls:
        lin.append((prev, h, prev, h))
        ln.append(h)
        prev = h
    # encoder-final: Linear(prev, 2) -> padded to (prev, LATENT_PAD)
    lin.append((prev, 2, prev, LATENT_PAD))
    # decoder-first: Linear(2, hls[-1]) -> padded to (LATENT_PAD, hls[-1])
    prev_log, prev_pad = 2, LATENT_PAD
    for h in reversed(hls):
        lin.append((prev_log, h, prev_pad, h))
        ln.append(h)
        prev_log = prev_pad = h
    lin.append((prev_log, in_channel, prev_log, in_channel))
    return lin, ln


def _autoencoder_kernel(op_sequence, *refs):
    """refs = (x_ref, param_ref_0, ..., param_ref_{P-1}, out_ref)."""
    x_ref = refs[0]
    out_ref = refs[-1]
    param_refs = iter(refs[1:-1])

    h = x_ref[...].astype(jnp.float32)
    for op in op_sequence:
        if op == "linear":
            w = next(param_refs)[...]  # bf16 (in, out)
            b = next(param_refs)[...]  # f32  (1, out)
            # bf16 x bf16 -> f32 accumulate on the MXU.
            h = jnp.dot(h.astype(w.dtype), w, preferred_element_type=jnp.float32) + b
        elif op == "ln":
            gamma = next(param_refs)[...]
            beta = next(param_refs)[...]
            mu = jnp.mean(h, axis=-1, keepdims=True)
            c = h - mu  # centered value computed once
            var = jnp.mean(c * c, axis=-1, keepdims=True)
            h = c * jax.lax.rsqrt(var + 1e-5) * gamma + beta
        elif op == "lrelu":
            h = jnp.where(h >= 0.0, h, 0.02 * h)
        elif op == "softmax":
            m = jnp.max(h, axis=-1, keepdims=True)
            e = jnp.exp(h - m)
            s = jnp.sum(e, axis=-1, keepdims=True)
            h = e * pl.reciprocal(s, approx=True)  # EUP slot instead of VALU divide
        else:
            raise ValueError(op)
    out_ref[...] = h.astype(out_ref.dtype)


def init_params(key, in_channel, hls):
    """PyTorch-default-style init.  Weights are bf16 (in, out); biases / LN
    params are f32 (1, d).  The latent Linear pair is zero-padded to
    LATENT_PAD lanes (numerically identical to the unpadded model)."""
    op_sequence = _build_op_sequence(hls)
    lin_dims, ln_dims = _layer_dims(in_channel, hls)
    lin_iter = iter(lin_dims)
    ln_iter = iter(ln_dims)

    params = []
    for op in op_sequence:
        if op == "linear":
            fan_in, fan_out, pad_in, pad_out = next(lin_iter)
            key, kw, kb = jax.random.split(key, 3)
            bound = 1.0 / float(fan_in) ** 0.5
            w_log = jax.random.uniform(kw, (fan_in, fan_out), jnp.float32, -bound, bound)
            b_log = jax.random.uniform(kb, (fan_out,), jnp.float32, -bound, bound)
            w = jnp.zeros((pad_in, pad_out), jnp.float32).at[:fan_in, :fan_out].set(w_log)
            b = jnp.zeros((1, pad_out), jnp.float32).at[0, :fan_out].set(b_log)
            params += [w.astype(jnp.bfloat16), b]
        elif op == "ln":
            d = next(ln_iter)
            params += [jnp.ones((1, d), jnp.float32), jnp.zeros((1, d), jnp.float32)]
    return op_sequence, params


def _choose_batch_tile(batch, max_tile_rows=256):
    if batch >= max_tile_rows:
        return max_tile_rows
    return max(8, ((batch + 7) // 8) * 8)


def autoencoder_forward(x, op_sequence, params, *, max_tile_rows=256):
    batch, in_channel = x.shape
    tb = _choose_batch_tile(batch, max_tile_rows)
    num_tiles = pl.cdiv(batch, tb)
    padded = num_tiles * tb
    if padded != batch:
        x_in = jnp.zeros((padded, in_channel), x.dtype).at[:batch].set(x)
    else:
        x_in = x

    kernel = functools.partial(_autoencoder_kernel, op_sequence)

    in_specs = [pl.BlockSpec((tb, in_channel), lambda i: (i, 0))]
    for p in params:
        # default-arg capture: robust against param rank changes (no late binding)
        in_specs.append(pl.BlockSpec(p.shape, lambda i, r=p.ndim: (0,) * r))
    out_spec = pl.BlockSpec((tb, in_channel), lambda i: (i, 0))

    # VMEM budget from the actual footprint: resident params + ~8 live f32
    # activation tiles + double-buffered x/out tiles, with 2x headroom,
    # clamped to <=48 MiB so it always fits v7x's 64 MiB per-core VMEM.
    param_bytes = sum(int(p.size) * p.dtype.itemsize for p in params)
    max_w = max([int(p.shape[-1]) for p in params] + [in_channel])
    act_bytes = 8 * tb * max_w * 4
    io_bytes = 2 * 2 * tb * in_channel * x.dtype.itemsize
    vmem_bytes = int(min(max(2 * (param_bytes + act_bytes + io_bytes), 16 << 20), 48 << 20))

    # Advisory cost estimate for XLA's scheduler.
    flops = 0
    it = iter(params)
    for op in op_sequence:
        if op == "linear":
            w = next(it)
            next(it)
            flops += 2 * padded * int(w.shape[0]) * int(w.shape[1])
        elif op == "ln":
            next(it)
            next(it)
    bytes_accessed = int(x_in.nbytes) + padded * in_channel * x.dtype.itemsize + param_bytes
    cost = pl.CostEstimate(
        flops=flops,
        transcendentals=padded * in_channel,
        bytes_accessed=bytes_accessed,
    )

    out = pl.pallas_call(
        kernel,
        out_shape=jax.ShapeDtypeStruct((padded, in_channel), x.dtype),
        grid_spec=pltpu.PrefetchScalarGridSpec(
            num_scalar_prefetch=0,
            grid=(num_tiles,),
            in_specs=in_specs,
            out_specs=out_spec,
        ),
        compiler_params=pltpu.CompilerParams(
            dimension_semantics=("parallel",),  # megacore sharding on v7x
            vmem_limit_bytes=vmem_bytes,
        ),
        cost_estimate=cost,
    )(x_in, *params)
    return out[:batch] if padded != batch else out


def _reference_forward(x, op_sequence, params):
    """Pure-JAX reference (mirrors PyTorch semantics, same bf16-weight /
    f32-accumulate matmul contract as the kernel) for validation."""
    it = iter(params)
    h = x.astype(jnp.float32)
    for op in op_sequence:
        if op == "linear":
            w, b = next(it), next(it)
            h = jnp.dot(h.astype(w.dtype), w, preferred_element_type=jnp.float32) + b
        elif op == "ln":
            g, bt = next(it), next(it)
            mu = jnp.mean(h, axis=-1, keepdims=True)
            c = h - mu
            var = jnp.mean(c * c, axis=-1, keepdims=True)
            h = c * jax.lax.rsqrt(var + 1e-5) * g + bt
        elif op == "lrelu":
            h = jnp.where(h >= 0, h, 0.02 * h)
        elif op == "softmax":
            h = jax.nn.softmax(h, axis=-1)
    return h


if __name__ == "__main__":
    in_channel = 32
    hidden_layer_sizes = (64, 32, 16)  # small, same structure as (512, 256, 128)
    batch = 8

    key = jax.random.PRNGKey(0)
    kx, kp = jax.random.split(key)
    x = jax.random.normal(kx, (batch, in_channel), jnp.float32)

    op_sequence, params = init_params(kp, in_channel, hidden_layer_sizes)

    out = autoencoder_forward(x, op_sequence, params)
    out = jax.block_until_ready(out)

    ref = _reference_forward(x, op_sequence, params)
    assert out.shape == (batch, in_channel)
    # tolerance covers MXU accumulation order + approx reciprocal in softmax
    assert jnp.allclose(out, ref, atol=2e-3, rtol=2e-2), "mismatch vs reference"
    # softmax rows should sum to ~1 (approx reciprocal => slightly relaxed)
    assert jnp.allclose(jnp.sum(out, axis=-1), 1.0, atol=2e-3)

    print("KERNEL_OK")
</pallas_src>

<mosaic_0001>
module attributes {stable_mosaic.version = 11 : i64} {
  func.func @_autoencoder_kernel(%arg0: i32, %arg1: memref<8x32xf32, #tpu.memory_space<vmem>>, %arg2: memref<32x64xbf16, #tpu.memory_space<vmem>>, %arg3: memref<1x64xf32, #tpu.memory_space<vmem>>, %arg4: memref<1x64xf32, #tpu.memory_space<vmem>>, %arg5: memref<1x64xf32, #tpu.memory_space<vmem>>, %arg6: memref<64x32xbf16, #tpu.memory_space<vmem>>, %arg7: memref<1x32xf32, #tpu.memory_space<vmem>>, %arg8: memref<1x32xf32, #tpu.memory_space<vmem>>, %arg9: memref<1x32xf32, #tpu.memory_space<vmem>>, %arg10: memref<32x16xbf16, #tpu.memory_space<vmem>>, %arg11: memref<1x16xf32, #tpu.memory_space<vmem>>, %arg12: memref<1x16xf32, #tpu.memory_space<vmem>>, %arg13: memref<1x16xf32, #tpu.memory_space<vmem>>, %arg14: memref<16x128xbf16, #tpu.memory_space<vmem>>, %arg15: memref<1x128xf32, #tpu.memory_space<vmem>>, %arg16: memref<128x16xbf16, #tpu.memory_space<vmem>>, %arg17: memref<1x16xf32, #tpu.memory_space<vmem>>, %arg18: memref<1x16xf32, #tpu.memory_space<vmem>>, %arg19: memref<1x16xf32, #tpu.memory_space<vmem>>, %arg20: memref<16x32xbf16, #tpu.memory_space<vmem>>, %arg21: memref<1x32xf32, #tpu.memory_space<vmem>>, %arg22: memref<1x32xf32, #tpu.memory_space<vmem>>, %arg23: memref<1x32xf32, #tpu.memory_space<vmem>>, %arg24: memref<32x64xbf16, #tpu.memory_space<vmem>>, %arg25: memref<1x64xf32, #tpu.memory_space<vmem>>, %arg26: memref<1x64xf32, #tpu.memory_space<vmem>>, %arg27: memref<1x64xf32, #tpu.memory_space<vmem>>, %arg28: memref<64x32xbf16, #tpu.memory_space<vmem>>, %arg29: memref<1x32xf32, #tpu.memory_space<vmem>>, %arg30: memref<8x32xf32, #tpu.memory_space<vmem>>) attributes {dimension_semantics = [#tpu.dimension_semantics<parallel>], iteration_bounds = array<i64: 1>, scalar_prefetch = 0 : i64, scratch_operands = 0 : i64, tpu.core_type = #tpu.core_type<tc>, window_params = [{transform_indices = @transform_0, window_bounds = array<i64: 8, 32>}, {pipeline_mode = #tpu.pipeline_mode<synchronous>, transform_indices = @transform_1, window_bounds = array<i64: 32, 64>}, {pipeline_mode = #tpu.pipeline_mode<synchronous>, transform_indices = @transform_2, window_bounds = array<i64: 1, 64>}, {pipeline_mode = #tpu.pipeline_mode<synchronous>, transform_indices = @transform_3, window_bounds = array<i64: 1, 64>}, {pipeline_mode = #tpu.pipeline_mode<synchronous>, transform_indices = @transform_4, window_bounds = array<i64: 1, 64>}, {pipeline_mode = #tpu.pipeline_mode<synchronous>, transform_indices = @transform_5, window_bounds = array<i64: 64, 32>}, {pipeline_mode = #tpu.pipeline_mode<synchronous>, transform_indices = @transform_6, window_bounds = array<i64: 1, 32>}, {pipeline_mode = #tpu.pipeline_mode<synchronous>, transform_indices = @transform_7, window_bounds = array<i64: 1, 32>}, {pipeline_mode = #tpu.pipeline_mode<synchronous>, transform_indices = @transform_8, window_bounds = array<i64: 1, 32>}, {pipeline_mode = #tpu.pipeline_mode<synchronous>, transform_indices = @transform_9, window_bounds = array<i64: 32, 16>}, {pipeline_mode = #tpu.pipeline_mode<synchronous>, transform_indices = @transform_10, window_bounds = array<i64: 1, 16>}, {pipeline_mode = #tpu.pipeline_mode<synchronous>, transform_indices = @transform_11, window_bounds = array<i64: 1, 16>}, {pipeline_mode = #tpu.pipeline_mode<synchronous>, transform_indices = @transform_12, window_bounds = array<i64: 1, 16>}, {pipeline_mode = #tpu.pipeline_mode<synchronous>, transform_indices = @transform_13, window_bounds = array<i64: 16, 128>}, {pipeline_mode = #tpu.pipeline_mode<synchronous>, transform_indices = @transform_14, window_bounds = array<i64: 1, 128>}, {pipeline_mode = #tpu.pipeline_mode<synchronous>, transform_indices = @transform_15, window_bounds = array<i64: 128, 16>}, {pipeline_mode = #tpu.pipeline_mode<synchronous>, transform_indices = @transform_16, window_bounds = array<i64: 1, 16>}, {pipeline_mode = #tpu.pipeline_mode<synchronous>, transform_indices = @transform_17, window_bounds = array<i64: 1, 16>}, {pipeline_mode = #tpu.pipeline_mode<synchronous>, transform_indices = @transform_18, window_bounds = array<i64: 1, 16>}, {pipeline_mode = #tpu.pipeline_mode<synchronous>, transform_indices = @transform_19, window_bounds = array<i64: 16, 32>}, {pipeline_mode = #tpu.pipeline_mode<synchronous>, transform_indices = @transform_20, window_bounds = array<i64: 1, 32>}, {pipeline_mode = #tpu.pipeline_mode<synchronous>, transform_indices = @transform_21, window_bounds = array<i64: 1, 32>}, {pipeline_mode = #tpu.pipeline_mode<synchronous>, transform_indices = @transform_22, window_bounds = array<i64: 1, 32>}, {pipeline_mode = #tpu.pipeline_mode<synchronous>, transform_indices = @transform_23, window_bounds = array<i64: 32, 64>}, {pipeline_mode = #tpu.pipeline_mode<synchronous>, transform_indices = @transform_24, window_bounds = array<i64: 1, 64>}, {pipeline_mode = #tpu.pipeline_mode<synchronous>, transform_indices = @transform_25, window_bounds = array<i64: 1, 64>}, {pipeline_mode = #tpu.pipeline_mode<synchronous>, transform_indices = @transform_26, window_bounds = array<i64: 1, 64>}, {pipeline_mode = #tpu.pipeline_mode<synchronous>, transform_indices = @transform_27, window_bounds = array<i64: 64, 32>}, {pipeline_mode = #tpu.pipeline_mode<synchronous>, transform_indices = @transform_28, window_bounds = array<i64: 1, 32>}, {transform_indices = @transform_29, window_bounds = array<i64: 8, 32>}]} {
    %c0 = arith.constant 0 : index
    %c0_0 = arith.constant 0 : index
    %0 = vector.load %arg1[%c0, %c0_0] : memref<8x32xf32, #tpu.memory_space<vmem>>, vector<8x32xf32>
    %c0_1 = arith.constant 0 : index
    %c0_2 = arith.constant 0 : index
    %1 = vector.load %arg2[%c0_1, %c0_2] : memref<32x64xbf16, #tpu.memory_space<vmem>>, vector<32x64xbf16>
    %c0_3 = arith.constant 0 : index
    %c0_4 = arith.constant 0 : index
    %2 = vector.load %arg3[%c0_3, %c0_4] : memref<1x64xf32, #tpu.memory_space<vmem>>, vector<1x64xf32>
    %3 = arith.truncf %0 : vector<8x32xf32> to vector<8x32xbf16>
    %cst = arith.constant dense<0.000000e+00> : vector<8x64xf32>
    %4 = tpu.matmul %3, %1, %cst {dimension_numbers = #tpu.dot_dimension_numbers<[1], [0], [0], [1], [0, 0, 1, 1], [], []>} : vector<8x32xbf16>, vector<32x64xbf16>, vector<8x64xf32> -> vector<8x64xf32>
    %5 = vector.broadcast %2 : vector<1x64xf32> to vector<8x64xf32>
    %6 = arith.addf %4, %5 : vector<8x64xf32>
    %c0_5 = arith.constant 0 : index
    %c0_6 = arith.constant 0 : index
    %7 = vector.load %arg4[%c0_5, %c0_6] : memref<1x64xf32, #tpu.memory_space<vmem>>, vector<1x64xf32>
    %c0_7 = arith.constant 0 : index
    %c0_8 = arith.constant 0 : index
    %8 = vector.load %arg5[%c0_7, %c0_8] : memref<1x64xf32, #tpu.memory_space<vmem>>, vector<1x64xf32>
    %cst_9 = arith.constant dense<0.000000e+00> : vector<8xf32>
    %9 = vector.multi_reduction <add>, %6, %cst_9 [1] : vector<8x64xf32> to vector<8xf32>
    %10 = vector.shape_cast %9 : vector<8xf32> to vector<8x1xf32>
    %cst_10 = arith.constant 6.400000e+01 : f32
    %11 = vector.broadcast %cst_10 : f32 to vector<8x1xf32>
    %12 = arith.divf %10, %11 : vector<8x1xf32>
    %13 = vector.broadcast %12 : vector<8x1xf32> to vector<8x64xf32>
    %14 = arith.subf %6, %13 : vector<8x64xf32>
    %15 = arith.mulf %14, %14 : vector<8x64xf32>
    %cst_11 = arith.constant dense<0.000000e+00> : vector<8xf32>
    %16 = vector.multi_reduction <add>, %15, %cst_11 [1] : vector<8x64xf32> to vector<8xf32>
    %17 = vector.shape_cast %16 : vector<8xf32> to vector<8x1xf32>
    %cst_12 = arith.constant 6.400000e+01 : f32
    %18 = vector.broadcast %cst_12 : f32 to vector<8x1xf32>
    %19 = arith.divf %17, %18 : vector<8x1xf32>
    %cst_13 = arith.constant 9.99999974E-6 : f32
    %20 = vector.broadcast %cst_13 : f32 to vector<8x1xf32>
    %21 = arith.addf %19, %20 : vector<8x1xf32>
    %22 = math.rsqrt %21 : vector<8x1xf32>
    %23 = vector.broadcast %22 : vector<8x1xf32> to vector<8x64xf32>
    %24 = arith.mulf %14, %23 : vector<8x64xf32>
    %25 = vector.broadcast %7 : vector<1x64xf32> to vector<8x64xf32>
    %26 = arith.mulf %24, %25 : vector<8x64xf32>
    %27 = vector.broadcast %8 : vector<1x64xf32> to vector<8x64xf32>
    %28 = arith.addf %26, %27 : vector<8x64xf32>
    %cst_14 = arith.constant 0.000000e+00 : f32
    %29 = vector.broadcast %cst_14 : f32 to vector<8x64xf32>
    %30 = arith.cmpf oge, %28, %29 : vector<8x64xf32>
    %cst_15 = arith.constant 2.000000e-02 : f32
    %31 = vector.broadcast %cst_15 : f32 to vector<8x64xf32>
    %32 = arith.mulf %31, %28 : vector<8x64xf32>
    %33 = arith.select %30, %28, %32 : vector<8x64xi1>, vector<8x64xf32>
    %c0_16 = arith.constant 0 : index
    %c0_17 = arith.constant 0 : index
    %34 = vector.load %arg6[%c0_16, %c0_17] : memref<64x32xbf16, #tpu.memory_space<vmem>>, vector<64x32xbf16>
    %c0_18 = arith.constant 0 : index
    %c0_19 = arith.constant 0 : index
    %35 = vector.load %arg7[%c0_18, %c0_19] : memref<1x32xf32, #tpu.memory_space<vmem>>, vector<1x32xf32>
    %36 = arith.truncf %33 : vector<8x64xf32> to vector<8x64xbf16>
    %cst_20 = arith.constant dense<0.000000e+00> : vector<8x32xf32>
    %37 = tpu.matmul %36, %34, %cst_20 {dimension_numbers = #tpu.dot_dimension_numbers<[1], [0], [0], [1], [0, 0, 1, 1], [], []>} : vector<8x64xbf16>, vector<64x32xbf16>, vector<8x32xf32> -> vector<8x32xf32>
    %38 = vector.broadcast %35 : vector<1x32xf32> to vector<8x32xf32>
    %39 = arith.addf %37, %38 : vector<8x32xf32>
    %c0_21 = arith.constant 0 : index
    %c0_22 = arith.constant 0 : index
    %40 = vector.load %arg8[%c0_21, %c0_22] : memref<1x32xf32, #tpu.memory_space<vmem>>, vector<1x32xf32>
    %c0_23 = arith.constant 0 : index
    %c0_24 = arith.constant 0 : index
    %41 = vector.load %arg9[%c0_23, %c0_24] : memref<1x32xf32, #tpu.memory_space<vmem>>, vector<1x32xf32>
    %cst_25 = arith.constant dense<0.000000e+00> : vector<8xf32>
    %42 = vector.multi_reduction <add>, %39, %cst_25 [1] : vector<8x32xf32> to vector<8xf32>
    %43 = vector.shape_cast %42 : vector<8xf32> to vector<8x1xf32>
    %cst_26 = arith.constant 3.200000e+01 : f32
    %44 = vector.broadcast %cst_26 : f32 to vector<8x1xf32>
    %45 = arith.divf %43, %44 : vector<8x1xf32>
    %46 = vector.broadcast %45 : vector<8x1xf32> to vector<8x32xf32>
    %47 = arith.subf %39, %46 : vector<8x32xf32>
    %48 = arith.mulf %47, %47 : vector<8x32xf32>
    %cst_27 = arith.constant dense<0.000000e+00> : vector<8xf32>
    %49 = vector.multi_reduction <add>, %48, %cst_27 [1] : vector<8x32xf32> to vector<8xf32>
    %50 = vector.shape_cast %49 : vector<8xf32> to vector<8x1xf32>
    %cst_28 = arith.constant 3.200000e+01 : f32
    %51 = vector.broadcast %cst_28 : f32 to vector<8x1xf32>
    %52 = arith.divf %50, %51 : vector<8x1xf32>
    %cst_29 = arith.constant 9.99999974E-6 : f32
    %53 = vector.broadcast %cst_29 : f32 to vector<8x1xf32>
    %54 = arith.addf %52, %53 : vector<8x1xf32>
    %55 = math.rsqrt %54 : vector<8x1xf32>
    %56 = vector.broadcast %55 : vector<8x1xf32> to vector<8x32xf32>
    %57 = arith.mulf %47, %56 : vector<8x32xf32>
    %58 = vector.broadcast %40 : vector<1x32xf32> to vector<8x32xf32>
    %59 = arith.mulf %57, %58 : vector<8x32xf32>
    %60 = vector.broadcast %41 : vector<1x32xf32> to vector<8x32xf32>
    %61 = arith.addf %59, %60 : vector<8x32xf32>
    %cst_30 = arith.constant 0.000000e+00 : f32
    %62 = vector.broadcast %cst_30 : f32 to vector<8x32xf32>
    %63 = arith.cmpf oge, %61, %62 : vector<8x32xf32>
    %cst_31 = arith.constant 2.000000e-02 : f32
    %64 = vector.broadcast %cst_31 : f32 to vector<8x32xf32>
    %65 = arith.mulf %64, %61 : vector<8x32xf32>
    %66 = arith.select %63, %61, %65 : vector<8x32xi1>, vector<8x32xf32>
    %c0_32 = arith.constant 0 : index
    %c0_33 = arith.constant 0 : index
    %67 = vector.load %arg10[%c0_32, %c0_33] : memref<32x16xbf16, #tpu.memory_space<vmem>>, vector<32x16xbf16>
    %c0_34 = arith.constant 0 : index
    %c0_35 = arith.constant 0 : index
    %68 = vector.load %arg11[%c0_34, %c0_35] : memref<1x16xf32, #tpu.memory_space<vmem>>, vector<1x16xf32>
    %69 = arith.truncf %66 : vector<8x32xf32> to vector<8x32xbf16>
    %cst_36 = arith.constant dense<0.000000e+00> : vector<8x16xf32>
    %70 = tpu.matmul %69, %67, %cst_36 {dimension_numbers = #tpu.dot_dimension_numbers<[1], [0], [0], [1], [0, 0, 1, 1], [], []>} : vector<8x32xbf16>, vector<32x16xbf16>, vector<8x16xf32> -> vector<8x16xf32>
    %71 = vector.broadcast %68 : vector<1x16xf32> to vector<8x16xf32>
    %72 = arith.addf %70, %71 : vector<8x16xf32>
    %c0_37 = arith.constant 0 : index
    %c0_38 = arith.constant 0 : index
    %73 = vector.load %arg12[%c0_37, %c0_38] : memref<1x16xf32, #tpu.memory_space<vmem>>, vector<1x16xf32>
    %c0_39 = arith.constant 0 : index
    %c0_40 = arith.constant 0 : index
    %74 = vector.load %arg13[%c0_39, %c0_40] : memref<1x16xf32, #tpu.memory_space<vmem>>, vector<1x16xf32>
    %cst_41 = arith.constant dense<0.000000e+00> : vector<8xf32>
    %75 = vector.multi_reduction <add>, %72, %cst_41 [1] : vector<8x16xf32> to vector<8xf32>
    %76 = vector.shape_cast %75 : vector<8xf32> to vector<8x1xf32>
    %cst_42 = arith.constant 1.600000e+01 : f32
    %77 = vector.broadcast %cst_42 : f32 to vector<8x1xf32>
    %78 = arith.divf %76, %77 : vector<8x1xf32>
    %79 = vector.broadcast %78 : vector<8x1xf32> to vector<8x16xf32>
    %80 = arith.subf %72, %79 : vector<8x16xf32>
    %81 = arith.mulf %80, %80 : vector<8x16xf32>
    %cst_43 = arith.constant dense<0.000000e+00> : vector<8xf32>
    %82 = vector.multi_reduction <add>, %81, %cst_43 [1] : vector<8x16xf32> to vector<8xf32>
    %83 = vector.shape_cast %82 : vector<8xf32> to vector<8x1xf32>
    %cst_44 = arith.constant 1.600000e+01 : f32
    %84 = vector.broadcast %cst_44 : f32 to vector<8x1xf32>
    %85 = arith.divf %83, %84 : vector<8x1xf32>
    %cst_45 = arith.constant 9.99999974E-6 : f32
    %86 = vector.broadcast %cst_45 : f32 to vector<8x1xf32>
    %87 = arith.addf %85, %86 : vector<8x1xf32>
    %88 = math.rsqrt %87 : vector<8x1xf32>
    %89 = vector.broadcast %88 : vector<8x1xf32> to vector<8x16xf32>
    %90 = arith.mulf %80, %89 : vector<8x16xf32>
    %91 = vector.broadcast %73 : vector<1x16xf32> to vector<8x16xf32>
    %92 = arith.mulf %90, %91 : vector<8x16xf32>
    %93 = vector.broadcast %74 : vector<1x16xf32> to vector<8x16xf32>
    %94 = arith.addf %92, %93 : vector<8x16xf32>
    %cst_46 = arith.constant 0.000000e+00 : f32
    %95 = vector.broadcast %cst_46 : f32 to vector<8x16xf32>
    %96 = arith.cmpf oge, %94, %95 : vector<8x16xf32>
    %cst_47 = arith.constant 2.000000e-02 : f32
    %97 = vector.broadcast %cst_47 : f32 to vector<8x16xf32>
    %98 = arith.mulf %97, %94 : vector<8x16xf32>
    %99 = arith.select %96, %94, %98 : vector<8x16xi1>, vector<8x16xf32>
    %c0_48 = arith.constant 0 : index
    %c0_49 = arith.constant 0 : index
    %100 = vector.load %arg14[%c0_48, %c0_49] : memref<16x128xbf16, #tpu.memory_space<vmem>>, vector<16x128xbf16>
    %c0_50 = arith.constant 0 : index
    %c0_51 = arith.constant 0 : index
    %101 = vector.load %arg15[%c0_50, %c0_51] : memref<1x128xf32, #tpu.memory_space<vmem>>, vector<1x128xf32>
    %102 = arith.truncf %99 : vector<8x16xf32> to vector<8x16xbf16>
    %cst_52 = arith.constant dense<0.000000e+00> : vector<8x128xf32>
    %103 = tpu.matmul %102, %100, %cst_52 {dimension_numbers = #tpu.dot_dimension_numbers<[1], [0], [0], [1], [0, 0, 1, 1], [], []>} : vector<8x16xbf16>, vector<16x128xbf16>, vector<8x128xf32> -> vector<8x128xf32>
    %104 = vector.broadcast %101 : vector<1x128xf32> to vector<8x128xf32>
    %105 = arith.addf %103, %104 : vector<8x128xf32>
    %c0_53 = arith.constant 0 : index
    %c0_54 = arith.constant 0 : index
    %106 = vector.load %arg16[%c0_53, %c0_54] : memref<128x16xbf16, #tpu.memory_space<vmem>>, vector<128x16xbf16>
    %c0_55 = arith.constant 0 : index
    %c0_56 = arith.constant 0 : index
    %107 = vector.load %arg17[%c0_55, %c0_56] : memref<1x16xf32, #tpu.memory_space<vmem>>, vector<1x16xf32>
    %108 = arith.truncf %105 : vector<8x128xf32> to vector<8x128xbf16>
    %cst_57 = arith.constant dense<0.000000e+00> : vector<8x16xf32>
    %109 = tpu.matmul %108, %106, %cst_57 {dimension_numbers = #tpu.dot_dimension_numbers<[1], [0], [0], [1], [0, 0, 1, 1], [], []>} : vector<8x128xbf16>, vector<128x16xbf16>, vector<8x16xf32> -> vector<8x16xf32>
    %110 = vector.broadcast %107 : vector<1x16xf32> to vector<8x16xf32>
    %111 = arith.addf %109, %110 : vector<8x16xf32>
    %c0_58 = arith.constant 0 : index
    %c0_59 = arith.constant 0 : index
    %112 = vector.load %arg18[%c0_58, %c0_59] : memref<1x16xf32, #tpu.memory_space<vmem>>, vector<1x16xf32>
    %c0_60 = arith.constant 0 : index
    %c0_61 = arith.constant 0 : index
    %113 = vector.load %arg19[%c0_60, %c0_61] : memref<1x16xf32, #tpu.memory_space<vmem>>, vector<1x16xf32>
    %cst_62 = arith.constant dense<0.000000e+00> : vector<8xf32>
    %114 = vector.multi_reduction <add>, %111, %cst_62 [1] : vector<8x16xf32> to vector<8xf32>
    %115 = vector.shape_cast %114 : vector<8xf32> to vector<8x1xf32>
    %cst_63 = arith.constant 1.600000e+01 : f32
    %116 = vector.broadcast %cst_63 : f32 to vector<8x1xf32>
    %117 = arith.divf %115, %116 : vector<8x1xf32>
    %118 = vector.broadcast %117 : vector<8x1xf32> to vector<8x16xf32>
    %119 = arith.subf %111, %118 : vector<8x16xf32>
    %120 = arith.mulf %119, %119 : vector<8x16xf32>
    %cst_64 = arith.constant dense<0.000000e+00> : vector<8xf32>
    %121 = vector.multi_reduction <add>, %120, %cst_64 [1] : vector<8x16xf32> to vector<8xf32>
    %122 = vector.shape_cast %121 : vector<8xf32> to vector<8x1xf32>
    %cst_65 = arith.constant 1.600000e+01 : f32
    %123 = vector.broadcast %cst_65 : f32 to vector<8x1xf32>
    %124 = arith.divf %122, %123 : vector<8x1xf32>
    %cst_66 = arith.constant 9.99999974E-6 : f32
    %125 = vector.broadcast %cst_66 : f32 to vector<8x1xf32>
    %126 = arith.addf %124, %125 : vector<8x1xf32>
    %127 = math.rsqrt %126 : vector<8x1xf32>
    %128 = vector.broadcast %127 : vector<8x1xf32> to vector<8x16xf32>
    %129 = arith.mulf %119, %128 : vector<8x16xf32>
    %130 = vector.broadcast %112 : vector<1x16xf32> to vector<8x16xf32>
    %131 = arith.mulf %129, %130 : vector<8x16xf32>
    %132 = vector.broadcast %113 : vector<1x16xf32> to vector<8x16xf32>
    %133 = arith.addf %131, %132 : vector<8x16xf32>
    %cst_67 = arith.constant 0.000000e+00 : f32
    %134 = vector.broadcast %cst_67 : f32 to vector<8x16xf32>
    %135 = arith.cmpf oge, %133, %134 : vector<8x16xf32>
    %cst_68 = arith.constant 2.000000e-02 : f32
    %136 = vector.broadcast %cst_68 : f32 to vector<8x16xf32>
    %137 = arith.mulf %136, %133 : vector<8x16xf32>
    %138 = arith.select %135, %133, %137 : vector<8x16xi1>, vector<8x16xf32>
    %c0_69 = arith.constant 0 : index
    %c0_70 = arith.constant 0 : index
    %139 = vector.load %arg20[%c0_69, %c0_70] : memref<16x32xbf16, #tpu.memory_space<vmem>>, vector<16x32xbf16>
    %c0_71 = arith.constant 0 : index
    %c0_72 = arith.constant 0 : index
    %140 = vector.load %arg21[%c0_71, %c0_72] : memref<1x32xf32, #tpu.memory_space<vmem>>, vector<1x32xf32>
    %141 = arith.truncf %138 : vector<8x16xf32> to vector<8x16xbf16>
    %cst_73 = arith.constant dense<0.000000e+00> : vector<8x32xf32>
    %142 = tpu.matmul %141, %139, %cst_73 {dimension_numbers = #tpu.dot_dimension_numbers<[1], [0], [0], [1], [0, 0, 1, 1], [], []>} : vector<8x16xbf16>, vector<16x32xbf16>, vector<8x32xf32> -> vector<8x32xf32>
    %143 = vector.broadcast %140 : vector<1x32xf32> to vector<8x32xf32>
    %144 = arith.addf %142, %143 : vector<8x32xf32>
    %c0_74 = arith.constant 0 : index
    %c0_75 = arith.constant 0 : index
    %145 = vector.load %arg22[%c0_74, %c0_75] : memref<1x32xf32, #tpu.memory_space<vmem>>, vector<1x32xf32>
    %c0_76 = arith.constant 0 : index
    %c0_77 = arith.constant 0 : index
    %146 = vector.load %arg23[%c0_76, %c0_77] : memref<1x32xf32, #tpu.memory_space<vmem>>, vector<1x32xf32>
    %cst_78 = arith.constant dense<0.000000e+00> : vector<8xf32>
    %147 = vector.multi_reduction <add>, %144, %cst_78 [1] : vector<8x32xf32> to vector<8xf32>
    %148 = vector.shape_cast %147 : vector<8xf32> to vector<8x1xf32>
    %cst_79 = arith.constant 3.200000e+01 : f32
    %149 = vector.broadcast %cst_79 : f32 to vector<8x1xf32>
    %150 = arith.divf %148, %149 : vector<8x1xf32>
    %151 = vector.broadcast %150 : vector<8x1xf32> to vector<8x32xf32>
    %152 = arith.subf %144, %151 : vector<8x32xf32>
    %153 = arith.mulf %152, %152 : vector<8x32xf32>
    %cst_80 = arith.constant dense<0.000000e+00> : vector<8xf32>
    %154 = vector.multi_reduction <add>, %153, %cst_80 [1] : vector<8x32xf32> to vector<8xf32>
    %155 = vector.shape_cast %154 : vector<8xf32> to vector<8x1xf32>
    %cst_81 = arith.constant 3.200000e+01 : f32
    %156 = vector.broadcast %cst_81 : f32 to vector<8x1xf32>
    %157 = arith.divf %155, %156 : vector<8x1xf32>
    %cst_82 = arith.constant 9.99999974E-6 : f32
    %158 = vector.broadcast %cst_82 : f32 to vector<8x1xf32>
    %159 = arith.addf %157, %158 : vector<8x1xf32>
    %160 = math.rsqrt %159 : vector<8x1xf32>
    %161 = vector.broadcast %160 : vector<8x1xf32> to vector<8x32xf32>
    %162 = arith.mulf %152, %161 : vector<8x32xf32>
    %163 = vector.broadcast %145 : vector<1x32xf32> to vector<8x32xf32>
    %164 = arith.mulf %162, %163 : vector<8x32xf32>
    %165 = vector.broadcast %146 : vector<1x32xf32> to vector<8x32xf32>
    %166 = arith.addf %164, %165 : vector<8x32xf32>
    %cst_83 = arith.constant 0.000000e+00 : f32
    %167 = vector.broadcast %cst_83 : f32 to vector<8x32xf32>
    %168 = arith.cmpf oge, %166, %167 : vector<8x32xf32>
    %cst_84 = arith.constant 2.000000e-02 : f32
    %169 = vector.broadcast %cst_84 : f32 to vector<8x32xf32>
    %170 = arith.mulf %169, %166 : vector<8x32xf32>
    %171 = arith.select %168, %166, %170 : vector<8x32xi1>, vector<8x32xf32>
    %c0_85 = arith.constant 0 : index
    %c0_86 = arith.constant 0 : index
    %172 = vector.load %arg24[%c0_85, %c0_86] : memref<32x64xbf16, #tpu.memory_space<vmem>>, vector<32x64xbf16>
    %c0_87 = arith.constant 0 : index
    %c0_88 = arith.constant 0 : index
    %173 = vector.load %arg25[%c0_87, %c0_88] : memref<1x64xf32, #tpu.memory_space<vmem>>, vector<1x64xf32>
    %174 = arith.truncf %171 : vector<8x32xf32> to vector<8x32xbf16>
    %cst_89 = arith.constant dense<0.000000e+00> : vector<8x64xf32>
    %175 = tpu.matmul %174, %172, %cst_89 {dimension_numbers = #tpu.dot_dimension_numbers<[1], [0], [0], [1], [0, 0, 1, 1], [], []>} : vector<8x32xbf16>, vector<32x64xbf16>, vector<8x64xf32> -> vector<8x64xf32>
    %176 = vector.broadcast %173 : vector<1x64xf32> to vector<8x64xf32>
    %177 = arith.addf %175, %176 : vector<8x64xf32>
    %c0_90 = arith.constant 0 : index
    %c0_91 = arith.constant 0 : index
    %178 = vector.load %arg26[%c0_90, %c0_91] : memref<1x64xf32, #tpu.memory_space<vmem>>, vector<1x64xf32>
    %c0_92 = arith.constant 0 : index
    %c0_93 = arith.constant 0 : index
    %179 = vector.load %arg27[%c0_92, %c0_93] : memref<1x64xf32, #tpu.memory_space<vmem>>, vector<1x64xf32>
    %cst_94 = arith.constant dense<0.000000e+00> : vector<8xf32>
    %180 = vector.multi_reduction <add>, %177, %cst_94 [1] : vector<8x64xf32> to vector<8xf32>
    %181 = vector.shape_cast %180 : vector<8xf32> to vector<8x1xf32>
    %cst_95 = arith.constant 6.400000e+01 : f32
    %182 = vector.broadcast %cst_95 : f32 to vector<8x1xf32>
    %183 = arith.divf %181, %182 : vector<8x1xf32>
    %184 = vector.broadcast %183 : vector<8x1xf32> to vector<8x64xf32>
    %185 = arith.subf %177, %184 : vector<8x64xf32>
    %186 = arith.mulf %185, %185 : vector<8x64xf32>
    %cst_96 = arith.constant dense<0.000000e+00> : vector<8xf32>
    %187 = vector.multi_reduction <add>, %186, %cst_96 [1] : vector<8x64xf32> to vector<8xf32>
    %188 = vector.shape_cast %187 : vector<8xf32> to vector<8x1xf32>
    %cst_97 = arith.constant 6.400000e+01 : f32
    %189 = vector.broadcast %cst_97 : f32 to vector<8x1xf32>
    %190 = arith.divf %188, %189 : vector<8x1xf32>
    %cst_98 = arith.constant 9.99999974E-6 : f32
    %191 = vector.broadcast %cst_98 : f32 to vector<8x1xf32>
    %192 = arith.addf %190, %191 : vector<8x1xf32>
    %193 = math.rsqrt %192 : vector<8x1xf32>
    %194 = vector.broadcast %193 : vector<8x1xf32> to vector<8x64xf32>
    %195 = arith.mulf %185, %194 : vector<8x64xf32>
    %196 = vector.broadcast %178 : vector<1x64xf32> to vector<8x64xf32>
    %197 = arith.mulf %195, %196 : vector<8x64xf32>
    %198 = vector.broadcast %179 : vector<1x64xf32> to vector<8x64xf32>
    %199 = arith.addf %197, %198 : vector<8x64xf32>
    %cst_99 = arith.constant 0.000000e+00 : f32
    %200 = vector.broadcast %cst_99 : f32 to vector<8x64xf32>
    %201 = arith.cmpf oge, %199, %200 : vector<8x64xf32>
    %cst_100 = arith.constant 2.000000e-02 : f32
    %202 = vector.broadcast %cst_100 : f32 to vector<8x64xf32>
    %203 = arith.mulf %202, %199 : vector<8x64xf32>
    %204 = arith.select %201, %199, %203 : vector<8x64xi1>, vector<8x64xf32>
    %c0_101 = arith.constant 0 : index
    %c0_102 = arith.constant 0 : index
    %205 = vector.load %arg28[%c0_101, %c0_102] : memref<64x32xbf16, #tpu.memory_space<vmem>>, vector<64x32xbf16>
    %c0_103 = arith.constant 0 : index
    %c0_104 = arith.constant 0 : index
    %206 = vector.load %arg29[%c0_103, %c0_104] : memref<1x32xf32, #tpu.memory_space<vmem>>, vector<1x32xf32>
    %207 = arith.truncf %204 : vector<8x64xf32> to vector<8x64xbf16>
    %cst_105 = arith.constant dense<0.000000e+00> : vector<8x32xf32>
    %208 = tpu.matmul %207, %205, %cst_105 {dimension_numbers = #tpu.dot_dimension_numbers<[1], [0], [0], [1], [0, 0, 1, 1], [], []>} : vector<8x64xbf16>, vector<64x32xbf16>, vector<8x32xf32> -> vector<8x32xf32>
    %209 = vector.broadcast %206 : vector<1x32xf32> to vector<8x32xf32>
    %210 = arith.addf %208, %209 : vector<8x32xf32>
    %cst_106 = arith.constant dense<0xFF800000> : vector<8xf32>
    %211 = vector.multi_reduction <maximumf>, %210, %cst_106 [1] : vector<8x32xf32> to vector<8xf32>
    %212 = vector.shape_cast %211 : vector<8xf32> to vector<8x1xf32>
    %213 = vector.broadcast %212 : vector<8x1xf32> to vector<8x32xf32>
    %214 = arith.subf %210, %213 : vector<8x32xf32>
    %215 = math.exp %214 : vector<8x32xf32>
    %cst_107 = arith.constant dense<0.000000e+00> : vector<8xf32>
    %216 = vector.multi_reduction <add>, %215, %cst_107 [1] : vector<8x32xf32> to vector<8xf32>
    %217 = vector.shape_cast %216 : vector<8xf32> to vector<8x1xf32>
    %218 = tpu.reciprocal %217 {approx = true} : vector<8x1xf32> -> vector<8x1xf32>
    %219 = vector.broadcast %218 : vector<8x1xf32> to vector<8x32xf32>
    %220 = arith.mulf %215, %219 : vector<8x32xf32>
    %c0_108 = arith.constant 0 : index
    %c0_109 = arith.constant 0 : index
    %221 = vector.load %arg30[%c0_108, %c0_109] : memref<8x32xf32, #tpu.memory_space<vmem>>, vector<8x32xf32>
    tpu.vector_store %arg30[%c0_108, %c0_109], %220 {strides = array<i32>} : memref<8x32xf32, #tpu.memory_space<vmem>>, vector<8x32xf32>,
    return
  }
  func.func @transform_0(%arg0: i32) -> (i32, i32) {
    %c0_i32 = arith.constant 0 : i32
    %c0_i32_0 = arith.constant 0 : i32
    return %arg0, %c0_i32 : i32, i32
  }
  func.func @transform_1(%arg0: i32) -> (i32, i32) {
    %c0_i32 = arith.constant 0 : i32
    %c0_i32_0 = arith.constant 0 : i32
    %c0_i32_1 = arith.constant 0 : i32
    return %c0_i32, %c0_i32_0 : i32, i32
  }
  func.func @transform_2(%arg0: i32) -> (i32, i32) {
    %c0_i32 = arith.constant 0 : i32
    %c0_i32_0 = arith.constant 0 : i32
    %c0_i32_1 = arith.constant 0 : i32
    return %c0_i32, %c0_i32_0 : i32, i32
  }
  func.func @transform_3(%arg0: i32) -> (i32, i32) {
    %c0_i32 = arith.constant 0 : i32
    %c0_i32_0 = arith.constant 0 : i32
    %c0_i32_1 = arith.constant 0 : i32
    return %c0_i32, %c0_i32_0 : i32, i32
  }
  func.func @transform_4(%arg0: i32) -> (i32, i32) {
    %c0_i32 = arith.constant 0 : i32
    %c0_i32_0 = arith.constant 0 : i32
    %c0_i32_1 = arith.constant 0 : i32
    return %c0_i32, %c0_i32_0 : i32, i32
  }
  func.func @transform_5(%arg0: i32) -> (i32, i32) {
    %c0_i32 = arith.constant 0 : i32
    %c0_i32_0 = arith.constant 0 : i32
    %c0_i32_1 = arith.constant 0 : i32
    return %c0_i32, %c0_i32_0 : i32, i32
  }
  func.func @transform_6(%arg0: i32) -> (i32, i32) {
    %c0_i32 = arith.constant 0 : i32
    %c0_i32_0 = arith.constant 0 : i32
    %c0_i32_1 = arith.constant 0 : i32
    return %c0_i32, %c0_i32_0 : i32, i32
  }
  func.func @transform_7(%arg0: i32) -> (i32, i32) {
    %c0_i32 = arith.constant 0 : i32
    %c0_i32_0 = arith.constant 0 : i32
    %c0_i32_1 = arith.constant 0 : i32
    return %c0_i32, %c0_i32_0 : i32, i32
  }
  func.func @transform_8(%arg0: i32) -> (i32, i32) {
    %c0_i32 = arith.constant 0 : i32
    %c0_i32_0 = arith.constant 0 : i32
    %c0_i32_1 = arith.constant 0 : i32
    return %c0_i32, %c0_i32_0 : i32, i32
  }
  func.func @transform_9(%arg0: i32) -> (i32, i32) {
    %c0_i32 = arith.constant 0 : i32
    %c0_i32_0 = arith.constant 0 : i32
    %c0_i32_1 = arith.constant 0 : i32
    return %c0_i32, %c0_i32_0 : i32, i32
  }
  func.func @transform_10(%arg0: i32) -> (i32, i32) {
    %c0_i32 = arith.constant 0 : i32
    %c0_i32_0 = arith.constant 0 : i32
    %c0_i32_1 = arith.constant 0 : i32
    return %c0_i32, %c0_i32_0 : i32, i32
  }
  func.func @transform_11(%arg0: i32) -> (i32, i32) {
    %c0_i32 = arith.constant 0 : i32
    %c0_i32_0 = arith.constant 0 : i32
    %c0_i32_1 = arith.constant 0 : i32
    return %c0_i32, %c0_i32_0 : i32, i32
  }
  func.func @transform_12(%arg0: i32) -> (i32, i32) {
    %c0_i32 = arith.constant 0 : i32
    %c0_i32_0 = arith.constant 0 : i32
    %c0_i32_1 = arith.constant 0 : i32
    return %c0_i32, %c0_i32_0 : i32, i32
  }
  func.func @transform_13(%arg0: i32) -> (i32, i32) {
    %c0_i32 = arith.constant 0 : i32
    %c0_i32_0 = arith.constant 0 : i32
    %c0_i32_1 = arith.constant 0 : i32
    return %c0_i32, %c0_i32_0 : i32, i32
  }
  func.func @transform_14(%arg0: i32) -> (i32, i32) {
    %c0_i32 = arith.constant 0 : i32
    %c0_i32_0 = arith.constant 0 : i32
    %c0_i32_1 = arith.constant 0 : i32
    return %c0_i32, %c0_i32_0 : i32, i32
  }
  func.func @transform_15(%arg0: i32) -> (i32, i32) {
    %c0_i32 = arith.constant 0 : i32
    %c0_i32_0 = arith.constant 0 : i32
    %c0_i32_1 = arith.constant 0 : i32
    return %c0_i32, %c0_i32_0 : i32, i32
  }
  func.func @transform_16(%arg0: i32) -> (i32, i32) {
    %c0_i32 = arith.constant 0 : i32
    %c0_i32_0 = arith.constant 0 : i32
    %c0_i32_1 = arith.constant 0 : i32
    return %c0_i32, %c0_i32_0 : i32, i32
  }
  func.func @transform_17(%arg0: i32) -> (i32, i32) {
    %c0_i32 = arith.constant 0 : i32
    %c0_i32_0 = arith.constant 0 : i32
    %c0_i32_1 = arith.constant 0 : i32
    return %c0_i32, %c0_i32_0 : i32, i32
  }
  func.func @transform_18(%arg0: i32) -> (i32, i32) {
    %c0_i32 = arith.constant 0 : i32
    %c0_i32_0 = arith.constant 0 : i32
    %c0_i32_1 = arith.constant 0 : i32
    return %c0_i32, %c0_i32_0 : i32, i32
  }
  func.func @transform_19(%arg0: i32) -> (i32, i32) {
    %c0_i32 = arith.constant 0 : i32
    %c0_i32_0 = arith.constant 0 : i32
    %c0_i32_1 = arith.constant 0 : i32
    return %c0_i32, %c0_i32_0 : i32, i32
  }
  func.func @transform_20(%arg0: i32) -> (i32, i32) {
    %c0_i32 = arith.constant 0 : i32
    %c0_i32_0 = arith.constant 0 : i32
    %c0_i32_1 = arith.constant 0 : i32
    return %c0_i32, %c0_i32_0 : i32, i32
  }
  func.func @transform_21(%arg0: i32) -> (i32, i32) {
    %c0_i32 = arith.constant 0 : i32
    %c0_i32_0 = arith.constant 0 : i32
    %c0_i32_1 = arith.constant 0 : i32
    return %c0_i32, %c0_i32_0 : i32, i32
  }
  func.func @transform_22(%arg0: i32) -> (i32, i32) {
    %c0_i32 = arith.constant 0 : i32
    %c0_i32_0 = arith.constant 0 : i32
    %c0_i32_1 = arith.constant 0 : i32
    return %c0_i32, %c0_i32_0 : i32, i32
  }
  func.func @transform_23(%arg0: i32) -> (i32, i32) {
    %c0_i32 = arith.constant 0 : i32
    %c0_i32_0 = arith.constant 0 : i32
    %c0_i32_1 = arith.constant 0 : i32
    return %c0_i32, %c0_i32_0 : i32, i32
  }
  func.func @transform_24(%arg0: i32) -> (i32, i32) {
    %c0_i32 = arith.constant 0 : i32
    %c0_i32_0 = arith.constant 0 : i32
    %c0_i32_1 = arith.constant 0 : i32
    return %c0_i32, %c0_i32_0 : i32, i32
  }
  func.func @transform_25(%arg0: i32) -> (i32, i32) {
    %c0_i32 = arith.constant 0 : i32
    %c0_i32_0 = arith.constant 0 : i32
    %c0_i32_1 = arith.constant 0 : i32
    return %c0_i32, %c0_i32_0 : i32, i32
  }
  func.func @transform_26(%arg0: i32) -> (i32, i32) {
    %c0_i32 = arith.constant 0 : i32
    %c0_i32_0 = arith.constant 0 : i32
    %c0_i32_1 = arith.constant 0 : i32
    return %c0_i32, %c0_i32_0 : i32, i32
  }
  func.func @transform_27(%arg0: i32) -> (i32, i32) {
    %c0_i32 = arith.constant 0 : i32
    %c0_i32_0 = arith.constant 0 : i32
    %c0_i32_1 = arith.constant 0 : i32
    return %c0_i32, %c0_i32_0 : i32, i32
  }
  func.func @transform_28(%arg0: i32) -> (i32, i32) {
    %c0_i32 = arith.constant 0 : i32
    %c0_i32_0 = arith.constant 0 : i32
    %c0_i32_1 = arith.constant 0 : i32
    return %c0_i32, %c0_i32_0 : i32, i32
  }
  func.func @transform_29(%arg0: i32) -> (i32, i32) {
    %c0_i32 = arith.constant 0 : i32
    %c0_i32_0 = arith.constant 0 : i32
    return %arg0, %c0_i32 : i32, i32
  }
}

</mosaic_0001>

<llo_original>
// kernel: tpu_custom_call.1
$region0: #{tpu_custom_call.1}
  #allocation0 [shape = 'u32[]', space=smem, size = 0x4, offset = 0x4, fixed_abs, tag = 'smem constant byte address 0x4 - core index']
  #allocation1 [shape = 'u32[72,128]{1,0:T(1,128)}', space=vmem, size = 0x9000, scoped, tag = 'internal scratch']
  %s0 = inlined_call_operand.smem [shape: u32[30], index: -1, kind: input, shape index: {}]
  %s1 = sld [smem:[%s0]]
  %s2 = scalar_lea.smem %s0, 1
  %s3 = sld [smem:[%s2]]
  %s4 = scalar_lea.smem %s0, 2
  %s5 = sld [smem:[%s4]]
  %s6 = scalar_lea.smem %s0, 3
  %s7 = sld [smem:[%s6]]
  %s8 = scalar_lea.smem %s0, 4
  %s9 = sld [smem:[%s8]]
  %s10 = scalar_lea.smem %s0, 5
  %s11 = sld [smem:[%s10]]
  %s12 = scalar_lea.smem %s0, 6
  %s13 = sld [smem:[%s12]]
  %s14 = scalar_lea.smem %s0, 7
  %s15 = sld [smem:[%s14]]
  %s16 = scalar_lea.smem %s0, 8
  %s17 = sld [smem:[%s16]]
  %s18 = scalar_lea.smem %s0, 9
  %s19 = sld [smem:[%s18]]
  %s20 = scalar_lea.smem %s0, 10
  %s21 = sld [smem:[%s20]]
  %s22 = scalar_lea.smem %s0, 11
  %s23 = sld [smem:[%s22]]
  %s24 = scalar_lea.smem %s0, 12
  %s25 = sld [smem:[%s24]]
  %s26 = scalar_lea.smem %s0, 13
  %s27 = sld [smem:[%s26]]
  %s28 = scalar_lea.smem %s0, 14
  %s29 = sld [smem:[%s28]]
  %s30 = scalar_lea.smem %s0, 15
  %s31 = sld [smem:[%s30]]
  %s32 = scalar_lea.smem %s0, 16
  %s33 = sld [smem:[%s32]]
  %s34 = scalar_lea.smem %s0, 17
  %s35 = sld [smem:[%s34]]
  %s36 = scalar_lea.smem %s0, 18
  %s37 = sld [smem:[%s36]]
  %s38 = scalar_lea.smem %s0, 19
  %s39 = sld [smem:[%s38]]
  %s40 = scalar_lea.smem %s0, 20
  %s41 = sld [smem:[%s40]]
  %s42 = scalar_lea.smem %s0, 21
  %s43 = sld [smem:[%s42]]
  %s44 = scalar_lea.smem %s0, 22
  %s45 = sld [smem:[%s44]]
  %s46 = scalar_lea.smem %s0, 23
  %s47 = sld [smem:[%s46]]
  %s48 = scalar_lea.smem %s0, 24
  %s49 = sld [smem:[%s48]]
  %s50 = scalar_lea.smem %s0, 25
  %s51 = sld [smem:[%s50]]
  %s52 = scalar_lea.smem %s0, 26
  %s53 = sld [smem:[%s52]]
  %s54 = scalar_lea.smem %s0, 27
  %s55 = sld [smem:[%s54]]
  %s56 = scalar_lea.smem %s0, 28
  %s57 = sld [smem:[%s56]]
  %s58 = scalar_lea.smem %s0, 29
  %s59 = sld [smem:[%s58]]
  %s60 = sld [smem:[#allocation0]]
  $region126: #{tpu_custom_call.1} parent=0
    _
  %s62 = ssub.s32 1, %s60
  %s63 = scalar_select 0, %s62, %s60
  $region1: #{tpu_custom_call.1} parent=0
    #allocation2 [shape = 'u8[4096]{0}', space=vmem, size = 0x1000, scoped, tag = 'output window, operand 0, single buffered']
    #allocation3 [shape = 's32[1]{0}', space=sflag, size = 0x4, scoped, tag = 'scoped memory for tpu_custom_call.1']
    %64 = vsyncpa [#allocation3], 0
    // Predicated region
    $region2: #{tpu_custom_call.1} parent=1 // pred_check
      _
    $region3: #{tpu_custom_call.1} parent=1 // pred_check_branch
      %66 = sbr.rel (0) target = $region5
    $region4: #{tpu_custom_call.1} parent=1 // pred_region
      _
    $region5: #{tpu_custom_call.1} parent=1 // pred_fallthru
      _
    // Predicated region
    $region6: #{tpu_custom_call.1} parent=1 // pred_check
      _
    $region7: #{tpu_custom_call.1} parent=1 // pred_check_branch
      %68 = sbr.rel (0) target = $region9
    $region8: #{tpu_custom_call.1} parent=1 // pred_region
      _
    $region9: #{tpu_custom_call.1} parent=1 // pred_fallthru
      _
    // Predicated region
    $region10: #{tpu_custom_call.1} parent=1 // pred_check
      _
    $region11: #{tpu_custom_call.1} parent=1 // pred_check_branch
      %70 = sbr.rel (0) target = $region13
    $region12: #{tpu_custom_call.1} parent=1 // pred_region
      _
    $region13: #{tpu_custom_call.1} parent=1 // pred_fallthru
      _
    // Predicated region
    $region14: #{tpu_custom_call.1} parent=1 // pred_check
      _
    $region15: #{tpu_custom_call.1} parent=1 // pred_check_branch
      %72 = sbr.rel (0) target = $region17
    $region16: #{tpu_custom_call.1} parent=1 // pred_region
      _
    $region17: #{tpu_custom_call.1} parent=1 // pred_fallthru
      _
    // Predicated region
    $region18: #{tpu_custom_call.1} parent=1 // pred_check
      _
    $region19: #{tpu_custom_call.1} parent=1 // pred_check_branch
      %74 = sbr.rel (0) target = $region21
    $region20: #{tpu_custom_call.1} parent=1 // pred_region
      _
    $region21: #{tpu_custom_call.1} parent=1 // pred_fallthru
      _
    // Predicated region
    $region22: #{tpu_custom_call.1} parent=1 // pred_check
      _
    $region23: #{tpu_custom_call.1} parent=1 // pred_check_branch
      %76 = sbr.rel (0) target = $region25
    $region24: #{tpu_custom_call.1} parent=1 // pred_region
      _
    $region25: #{tpu_custom_call.1} parent=1 // pred_fallthru
      _
    // Predicated region
    $region26: #{tpu_custom_call.1} parent=1 // pred_check
      _
    $region27: #{tpu_custom_call.1} parent=1 // pred_check_branch
      %78 = sbr.rel (0) target = $region29
    $region28: #{tpu_custom_call.1} parent=1 // pred_region
      _
    $region29: #{tpu_custom_call.1} parent=1 // pred_fallthru
      _
    // Predicated region
    $region30: #{tpu_custom_call.1} parent=1 // pred_check
      _
    $region31: #{tpu_custom_call.1} parent=1 // pred_check_branch
      %80 = sbr.rel (0) target = $region33
    $region32: #{tpu_custom_call.1} parent=1 // pred_region
      _
    $region33: #{tpu_custom_call.1} parent=1 // pred_fallthru
      _
    // Predicated region
    $region34: #{tpu_custom_call.1} parent=1 // pred_check
      _
    $region35: #{tpu_custom_call.1} parent=1 // pred_check_branch
      %82 = sbr.rel (0) target = $region37
    $region36: #{tpu_custom_call.1} parent=1 // pred_region
      _
    $region37: #{tpu_custom_call.1} parent=1 // pred_fallthru
      _
    // Predicated region
    $region38: #{tpu_custom_call.1} parent=1 // pred_check
      _
    $region39: #{tpu_custom_call.1} parent=1 // pred_check_branch
      %84 = sbr.rel (0) target = $region41
    $region40: #{tpu_custom_call.1} parent=1 // pred_region
      _
    $region41: #{tpu_custom_call.1} parent=1 // pred_fallthru
      _
    // Predicated region
    $region42: #{tpu_custom_call.1} parent=1 // pred_check
      _
    $region43: #{tpu_custom_call.1} parent=1 // pred_check_branch
      %86 = sbr.rel (0) target = $region45
    $region44: #{tpu_custom_call.1} parent=1 // pred_region
      _
    $region45: #{tpu_custom_call.1} parent=1 // pred_fallthru
      _
    // Predicated region
    $region46: #{tpu_custom_call.1} parent=1 // pred_check
      _
    $region47: #{tpu_custom_call.1} parent=1 // pred_check_branch
      %88 = sbr.rel (0) target = $region49
    $region48: #{tpu_custom_call.1} parent=1 // pred_region
      _
    $region49: #{tpu_custom_call.1} parent=1 // pred_fallthru
      _
    // Predicated region
    $region50: #{tpu_custom_call.1} parent=1 // pred_check
      _
    $region51: #{tpu_custom_call.1} parent=1 // pred_check_branch
      %90 = sbr.rel (0) target = $region53
    $region52: #{tpu_custom_call.1} parent=1 // pred_region
      _
    $region53: #{tpu_custom_call.1} parent=1 // pred_fallthru
      _
    // Predicated region
    $region54: #{tpu_custom_call.1} parent=1 // pred_check
      _
    $region55: #{tpu_custom_call.1} parent=1 // pred_check_branch
      %92 = sbr.rel (0) target = $region57
    $region56: #{tpu_custom_call.1} parent=1 // pred_region
      _
    $region57: #{tpu_custom_call.1} parent=1 // pred_fallthru
      _
    // Predicated region
    $region58: #{tpu_custom_call.1} parent=1 // pred_check
      _
    $region59: #{tpu_custom_call.1} parent=1 // pred_check_branch
      %94 = sbr.rel (0) target = $region61
    $region60: #{tpu_custom_call.1} parent=1 // pred_region
      _
    $region61: #{tpu_custom_call.1} parent=1 // pred_fallthru
      _
    // Predicated region
    $region62: #{tpu_custom_call.1} parent=1 // pred_check
      _
    $region63: #{tpu_custom_call.1} parent=1 // pred_check_branch
      %96 = sbr.rel (0) target = $region65
    $region64: #{tpu_custom_call.1} parent=1 // pred_region
      _
    $region65: #{tpu_custom_call.1} parent=1 // pred_fallthru
      _
    // Predicated region
    $region66: #{tpu_custom_call.1} parent=1 // pred_check
      _
    $region67: #{tpu_custom_call.1} parent=1 // pred_check_branch
      %98 = sbr.rel (0) target = $region69
    $region68: #{tpu_custom_call.1} parent=1 // pred_region
      _
    $region69: #{tpu_custom_call.1} parent=1 // pred_fallthru
      _
    // Predicated region
    $region70: #{tpu_custom_call.1} parent=1 // pred_check
      _
    $region71: #{tpu_custom_call.1} parent=1 // pred_check_branch
      %100 = sbr.rel (0) target = $region73
    $region72: #{tpu_custom_call.1} parent=1 // pred_region
      _
    $region73: #{tpu_custom_call.1} parent=1 // pred_fallthru
      _
    // Predicated region
    $region74: #{tpu_custom_call.1} parent=1 // pred_check
      _
    $region75: #{tpu_custom_call.1} parent=1 // pred_check_branch
      %102 = sbr.rel (0) target = $region77
    $region76: #{tpu_custom_call.1} parent=1 // pred_region
      _
    $region77: #{tpu_custom_call.1} parent=1 // pred_fallthru
      _
    // Predicated region
    $region78: #{tpu_custom_call.1} parent=1 // pred_check
      _
    $region79: #{tpu_custom_call.1} parent=1 // pred_check_branch
      %104 = sbr.rel (0) target = $region81
    $region80: #{tpu_custom_call.1} parent=1 // pred_region
      _
    $region81: #{tpu_custom_call.1} parent=1 // pred_fallthru
      _
    // Predicated region
    $region82: #{tpu_custom_call.1} parent=1 // pred_check
      _
    $region83: #{tpu_custom_call.1} parent=1 // pred_check_branch
      %106 = sbr.rel (0) target = $region85
    $region84: #{tpu_custom_call.1} parent=1 // pred_region
      _
    $region85: #{tpu_custom_call.1} parent=1 // pred_fallthru
      _
    // Predicated region
    $region86: #{tpu_custom_call.1} parent=1 // pred_check
      _
    $region87: #{tpu_custom_call.1} parent=1 // pred_check_branch
      %108 = sbr.rel (0) target = $region89
    $region88: #{tpu_custom_call.1} parent=1 // pred_region
      _
    $region89: #{tpu_custom_call.1} parent=1 // pred_fallthru
      _
    // Predicated region
    $region90: #{tpu_custom_call.1} parent=1 // pred_check
      _
    $region91: #{tpu_custom_call.1} parent=1 // pred_check_branch
      %110 = sbr.rel (0) target = $region93
    $region92: #{tpu_custom_call.1} parent=1 // pred_region
      _
    $region93: #{tpu_custom_call.1} parent=1 // pred_fallthru
      _
    // Predicated region
    $region94: #{tpu_custom_call.1} parent=1 // pred_check
      _
    $region95: #{tpu_custom_call.1} parent=1 // pred_check_branch
      %112 = sbr.rel (0) target = $region97
    $region96: #{tpu_custom_call.1} parent=1 // pred_region
      _
    $region97: #{tpu_custom_call.1} parent=1 // pred_fallthru
      _
    // Predicated region
    $region98: #{tpu_custom_call.1} parent=1 // pred_check
      _
    $region99: #{tpu_custom_call.1} parent=1 // pred_check_branch
      %114 = sbr.rel (0) target = $region101
    $region100: #{tpu_custom_call.1} parent=1 // pred_region
      _
    $region101: #{tpu_custom_call.1} parent=1 // pred_fallthru
      _
    // Predicated region
    $region102: #{tpu_custom_call.1} parent=1 // pred_check
      _
    $region103: #{tpu_custom_call.1} parent=1 // pred_check_branch
      %116 = sbr.rel (0) target = $region105
    $region104: #{tpu_custom_call.1} parent=1 // pred_region
      _
    $region105: #{tpu_custom_call.1} parent=1 // pred_fallthru
      _
    // Predicated region
    $region106: #{tpu_custom_call.1} parent=1 // pred_check
      _
    $region107: #{tpu_custom_call.1} parent=1 // pred_check_branch
      %118 = sbr.rel (0) target = $region109
    $region108: #{tpu_custom_call.1} parent=1 // pred_region
      _
    $region109: #{tpu_custom_call.1} parent=1 // pred_fallthru
      _
    // Predicated region
    $region110: #{tpu_custom_call.1} parent=1 // pred_check
      _
    $region111: #{tpu_custom_call.1} parent=1 // pred_check_branch
      %120 = sbr.rel (0) target = $region113
    $region112: #{tpu_custom_call.1} parent=1 // pred_region
      _
    $region113: #{tpu_custom_call.1} parent=1 // pred_fallthru
      _
    // Predicated region
    $region114: #{tpu_custom_call.1} parent=1 // pred_check
      _
    $region115: #{tpu_custom_call.1} parent=1 // pred_check_branch
      %122 = sbr.rel (0) target = $region117
    $region116: #{tpu_custom_call.1} parent=1 // pred_region
      _
    $region117: #{tpu_custom_call.1} parent=1 // pred_fallthru
      _
    %v124 = vld [vmem:[%s1] sm:$0xff]
    %v125 = vld [vmem:[%s3] sm:$0xf]
    %v126 = vld [vmem:[%s3 + $0x4] sm:$0xf]
    %v127 = vld [vmem:[%s3 + $0x8] sm:$0xf]
    %v128 = vld [vmem:[%s3 + $0xc] sm:$0xf]
    %v129 = vld [vmem:[%s5] sm:$0x1]
    %v130 = vpack.c.bf16 %v124, %v124
    %v132 = vperm.slane %v129, 0
    %v138 = vunpack.c.l.b16 %v125
    %v139 = vunpack.c.l.b16 %v126
    %v140 = vunpack.c.l.b16 %v127
    %v141 = vunpack.c.l.b16 %v128
    %v142 = vpack.c.b16 %v139, %v138
    %v143 = vpack.c.b16 %v141, %v140
    %vm146 = vcmask 261120
    %v148 = vsel %vm146, %v130, 0
    %150 = vmatpush.bf16.msra.mxu0 0
    %151 = vmatpush.bf16.msra.mxu0 0
    %152 = vmatpush.bf16.msra.mxu0 0
    %153 = vmatpush.bf16.msra.mxu0 0
    %154 = vmatpush.bf16.msra.mxu0 0
    %155 = vmatpush.bf16.msra.mxu0 0
    %156 = vmatpush.bf16.msra.mxu0 %v143
    %157 = vmatpush.bf16.msra.mxu0 %v142
    %158 = vmatmul.bf16.gmra.mxu0 %v148
    %v159 = vpop.f32.mrf.mxu0
    %v160 = vadd.f32 %v132, %v159
    %v161 = vpop.f32.mrf.mxu0
    %162 = vdwg.mxu0
    %v163 = vld [vmem:[%s7] sm:$0x1]
    %v164 = vld [vmem:[%s9] sm:$0x1]
    %vm165 = vcmask 523264
    %v166 = vsel %vm165, %v160, 0.0
    %167 = vadd.xlane.f32.xlu0 %v166
    %v168 = vpop.xlane.xlu0 %167
    %v169 = vrcp.pop 64.0
    %v170 = vmul.f32 64.0, %v169
    %v171 = vsub.f32 1.0, %v170
    %v172 = vmul.f32 %v169, %v171
    %v173 = vadd.f32 %v169, %v172
    %vm174 = vweird.f32 %v169
    %v175 = vsel %vm174, %v169, %v173
    %v176 = vmul.f32 %v168, %v175
    %v177 = vsub.f32 %v160, %v176
    %v178 = vmul.f32 %v177, %v177
    %v179 = vsel %vm165, %v178, 0.0
    %180 = vadd.xlane.f32.xlu0 %v179
    %v181 = vpop.xlane.xlu0 %180
    %v182 = vmul.f32 %v181, %v175
    %v183 = vadd.f32 %v182, 1e-05
    %v184 = vrsqrt.pop %v183
    %v185 = vmul.f32 %v184, %v183
    %v186 = vmul.f32 %v185, %v184
    %v187 = vmul.f32 0.5, %v186
    %v188 = vsub.f32 1.5, %v187
    %v189 = vmul.f32 %v184, %v188
    %vm190 = vweird.f32 %v183
    %vm191 = vweird.f32 %v184
    %vm192 = vmor %vm190, %vm191
    %v193 = vsel %vm192, %v184, %v189
    %v194 = vmul.f32 %v177, %v193
    %v196 = vperm.slane %v163, 0
    %v198 = vmul.f32 %v194, %v196
    %v200 = vperm.slane %v164, 0
    %v202 = vadd.f32 %v198, %v200
    %vm203 = vcmp.ge.f32.partialorder %v202, 0.0
    %v204 = vmul.f32 %v202, 0.02
    %v205 = vsel %vm203, %v202, %v204
    %v206 = vld [vmem:[%s11] sm:$0xf]
    %v207 = vld [vmem:[%s11 + $0x4] sm:$0xf]
    %v208 = vld [vmem:[%s11 + $0x8] sm:$0xf]
    %v209 = vld [vmem:[%s11 + $0xc] sm:$0xf]
    %v210 = vld [vmem:[%s11 + $0x10] sm:$0xf]
    %v211 = vld [vmem:[%s11 + $0x14] sm:$0xf]
    %v212 = vld [vmem:[%s11 + $0x18] sm:$0xf]
    %v213 = vld [vmem:[%s11 + $0x1c] sm:$0xf]
    %v214 = vld [vmem:[%s13] sm:$0x1]
    %v215 = vpack.c.bf16 %v205, %v205
    %v217 = vperm.slane %v214, 0
    %v227 = vunpack.c.l.b16 %v206
    %v228 = vunpack.c.l.b16 %v207
    %v229 = vunpack.c.l.b16 %v208
    %v230 = vunpack.c.l.b16 %v209
    %v231 = vunpack.c.l.b16 %v210
    %v232 = vunpack.c.l.b16 %v211
    %v233 = vunpack.c.l.b16 %v212
    %v234 = vunpack.c.l.b16 %v213
    %v235 = vpack.c.b16 %v228, %v227
    %v236 = vpack.c.b16 %v230, %v229
    %v237 = vpack.c.b16 %v232, %v231
    %v238 = vpack.c.b16 %v234, %v233
    %v244 = vsel %vm165, %v215, 0
    %246 = vmatpush.bf16.msra.mxu0 0
    %247 = vmatpush.bf16.msra.mxu0 0
    %248 = vmatpush.bf16.msra.mxu0 0
    %249 = vmatpush.bf16.msra.mxu0 0
    %250 = vmatpush.bf16.msra.mxu0 %v238
    %251 = vmatpush.bf16.msra.mxu0 %v237
    %252 = vmatpush.bf16.msra.mxu0 %v236
    %253 = vmatpush.bf16.msra.mxu0 %v235
    %254 = vmatmul.bf16.gmra.mxu0 %v244
    %v255 = vpop.f32.mrf.mxu0
    %v256 = vadd.f32 %v217, %v255
    %v257 = vpop.f32.mrf.mxu0
    %258 = vdwg.mxu0
    %v259 = vld [vmem:[%s15] sm:$0x1]
    %v260 = vld [vmem:[%s17] sm:$0x1]
    %v261 = vsel %vm146, %v256, 0.0
    %262 = vadd.xlane.f32.xlu0 %v261
    %v263 = vpop.xlane.xlu0 %262
    %v264 = vrcp.pop 32.0
    %v265 = vmul.f32 32.0, %v264
    %v266 = vsub.f32 1.0, %v265
    %v267 = vmul.f32 %v264, %v266
    %v268 = vadd.f32 %v264, %v267
    %vm269 = vweird.f32 %v264
    %v270 = vsel %vm269, %v264, %v268
    %v271 = vmul.f32 %v263, %v270
    %v272 = vsub.f32 %v256, %v271
    %v273 = vmul.f32 %v272, %v272
    %v274 = vsel %vm146, %v273, 0.0
    %275 = vadd.xlane.f32.xlu0 %v274
    %v276 = vpop.xlane.xlu0 %275
    %v277 = vmul.f32 %v276, %v270
    %v278 = vadd.f32 %v277, 1e-05
    %v279 = vrsqrt.pop %v278
    %v280 = vmul.f32 %v279, %v278
    %v281 = vmul.f32 %v280, %v279
    %v282 = vmul.f32 0.5, %v281
    %v283 = vsub.f32 1.5, %v282
    %v284 = vmul.f32 %v279, %v283
    %vm285 = vweird.f32 %v278
    %vm286 = vweird.f32 %v279
    %vm287 = vmor %vm285, %vm286
    %v288 = vsel %vm287, %v279, %v284
    %v289 = vmul.f32 %v272, %v288
    %v291 = vperm.slane %v259, 0
    %v293 = vmul.f32 %v289, %v291
    %v295 = vperm.slane %v260, 0
    %v297 = vadd.f32 %v293, %v295
    %vm298 = vcmp.ge.f32.partialorder %v297, 0.0
    %v299 = vmul.f32 %v297, 0.02
    %v300 = vsel %vm298, %v297, %v299
    %v301 = vld [vmem:[%s19] sm:$0xf]
    %v302 = vld [vmem:[%s19 + $0x4] sm:$0xf]
    %v303 = vld [vmem:[%s19 + $0x8] sm:$0xf]
    %v304 = vld [vmem:[%s19 + $0xc] sm:$0xf]
    %v305 = vld [vmem:[%s21] sm:$0x1]
    %v306 = vpack.c.bf16 %v300, %v300
    %v308 = vperm.slane %v305, 0
    %v314 = vunpack.c.l.b16 %v301
    %v315 = vunpack.c.l.b16 %v302
    %v316 = vunpack.c.l.b16 %v303
    %v317 = vunpack.c.l.b16 %v304
    %v318 = vpack.c.b16 %v315, %v314
    %v319 = vpack.c.b16 %v317, %v316
    %v323 = vsel %vm146, %v306, 0
    %325 = vmatpush.bf16.msra.mxu0 0
    %326 = vmatpush.bf16.msra.mxu0 0
    %327 = vmatpush.bf16.msra.mxu0 0
    %328 = vmatpush.bf16.msra.mxu0 0
    %329 = vmatpush.bf16.msra.mxu0 0
    %330 = vmatpush.bf16.msra.mxu0 0
    %331 = vmatpush.bf16.msra.mxu0 %v319
    %332 = vmatpush.bf16.msra.mxu0 %v318
    %333 = vmatmul.bf16.gmra.mxu0 %v323
    %v334 = vpop.f32.mrf.mxu0
    %v335 = vadd.f32 %v308, %v334
    %v336 = vpop.f32.mrf.mxu0
    %337 = vdwg.mxu0
    %v338 = vld [vmem:[%s23] sm:$0x1]
    %v339 = vld [vmem:[%s25] sm:$0x1]
    %vm340 = vcmask 130048
    %v341 = vsel %vm340, %v335, 0.0
    %342 = vadd.xlane.f32.xlu0 %v341
    %v343 = vpop.xlane.xlu0 %342
    %v344 = vrcp.pop 16.0
    %v345 = vmul.f32 16.0, %v344
    %v346 = vsub.f32 1.0, %v345
    %v347 = vmul.f32 %v344, %v346
    %v348 = vadd.f32 %v344, %v347
    %vm349 = vweird.f32 %v344
    %v350 = vsel %vm349, %v344, %v348
    %v351 = vmul.f32 %v343, %v350
    %v352 = vsub.f32 %v335, %v351
    %v353 = vmul.f32 %v352, %v352
    %v354 = vsel %vm340, %v353, 0.0
    %355 = vadd.xlane.f32.xlu0 %v354
    %v356 = vpop.xlane.xlu0 %355
    %v357 = vmul.f32 %v356, %v350
    %v358 = vadd.f32 %v357, 1e-05
    %v359 = vrsqrt.pop %v358
    %v360 = vmul.f32 %v359, %v358
    %v361 = vmul.f32 %v360, %v359
    %v362 = vmul.f32 0.5, %v361
    %v363 = vsub.f32 1.5, %v362
    %v364 = vmul.f32 %v359, %v363
    %vm365 = vweird.f32 %v358
    %vm366 = vweird.f32 %v359
    %vm367 = vmor %vm365, %vm366
    %v368 = vsel %vm367, %v359, %v364
    %v369 = vmul.f32 %v352, %v368
    %v371 = vperm.slane %v338, 0
    %v373 = vmul.f32 %v369, %v371
    %v375 = vperm.slane %v339, 0
    %v377 = vadd.f32 %v373, %v375
    %vm378 = vcmp.ge.f32.partialorder %v377, 0.0
    %v379 = vmul.f32 %v377, 0.02
    %v380 = vsel %vm378, %v377, %v379
    %v381 = vld [vmem:[%s27] sm:$0xf]
    %v382 = vld [vmem:[%s27 + $0x4] sm:$0xf]
    %v383 = vld [vmem:[%s29] sm:$0x1]
    %v384 = vpack.c.bf16 %v380, %v380
    %v386 = vperm.slane %v383, 0
    %v390 = vunpack.c.l.b16 %v381
    %v391 = vunpack.c.l.b16 %v382
    %v392 = vpack.c.b16 %v391, %v390
    %v395 = vsel %vm340, %v384, 0
    %397 = vmatpush.bf16.msra.mxu0 0
    %398 = vmatpush.bf16.msra.mxu0 0
    %399 = vmatpush.bf16.msra.mxu0 0
    %400 = vmatpush.bf16.msra.mxu0 0
    %401 = vmatpush.bf16.msra.mxu0 0
    %402 = vmatpush.bf16.msra.mxu0 0
    %403 = vmatpush.bf16.msra.mxu0 0
    %404 = vmatpush.bf16.msra.mxu0 %v392
    %405 = vmatmul.bf16.gmra.mxu0 %v395
    %v406 = vpop.f32.mrf.mxu0
    %v407 = vadd.f32 %v386, %v406
    %v408 = vpop.f32.mrf.mxu0
    %409 = vdwg.mxu0
    %v410 = vld [vmem:[%s31] sm:$0xf]
    %v411 = vld [vmem:[%s31 + $0x4] sm:$0xf]
    %v412 = vld [vmem:[%s31 + $0x8] sm:$0xf]
    %v413 = vld [vmem:[%s31 + $0xc] sm:$0xf]
    %v414 = vld [vmem:[%s31 + $0x10] sm:$0xf]
    %v415 = vld [vmem:[%s31 + $0x14] sm:$0xf]
    %v416 = vld [vmem:[%s31 + $0x18] sm:$0xf]
    %v417 = vld [vmem:[%s31 + $0x1c] sm:$0xf]
    %v418 = vld [vmem:[%s31 + $0x20] sm:$0xf]
    %v419 = vld [vmem:[%s31 + $0x24] sm:$0xf]
    %v420 = vld [vmem:[%s31 + $0x28] sm:$0xf]
    %v421 = vld [vmem:[%s31 + $0x2c] sm:$0xf]
    %v422 = vld [vmem:[%s31 + $0x30] sm:$0xf]
    %v423 = vld [vmem:[%s31 + $0x34] sm:$0xf]
    %v424 = vld [vmem:[%s31 + $0x38] sm:$0xf]
    %v425 = vld [vmem:[%s31 + $0x3c] sm:$0xf]
    %v426 = vld [vmem:[%s33] sm:$0x1]
    %v427 = vpack.c.bf16 %v407, %v407
    %v429 = vperm.slane %v426, 0
    %v447 = vunpack.c.l.b16 %v410
    %v448 = vunpack.c.l.b16 %v411
    %v449 = vunpack.c.l.b16 %v412
    %v450 = vunpack.c.l.b16 %v413
    %v451 = vunpack.c.l.b16 %v414
    %v452 = vunpack.c.l.b16 %v415
    %v453 = vunpack.c.l.b16 %v416
    %v454 = vunpack.c.l.b16 %v417
    %v455 = vunpack.c.l.b16 %v418
    %v456 = vunpack.c.l.b16 %v419
    %v457 = vunpack.c.l.b16 %v420
    %v458 = vunpack.c.l.b16 %v421
    %v459 = vunpack.c.l.b16 %v422
    %v460 = vunpack.c.l.b16 %v423
    %v461 = vunpack.c.l.b16 %v424
    %v462 = vunpack.c.l.b16 %v425
    %v463 = vpack.c.b16 %v448, %v447
    %v464 = vpack.c.b16 %v450, %v449
    %v465 = vpack.c.b16 %v452, %v451
    %v466 = vpack.c.b16 %v454, %v453
    %v467 = vpack.c.b16 %v456, %v455
    %v468 = vpack.c.b16 %v458, %v457
    %v469 = vpack.c.b16 %v460, %v459
    %v470 = vpack.c.b16 %v462, %v461
    %479 = vmatpush.bf16.msra.mxu0 %v470
    %480 = vmatpush.bf16.msra.mxu0 %v469
    %481 = vmatpush.bf16.msra.mxu0 %v468
    %482 = vmatpush.bf16.msra.mxu0 %v467
    %483 = vmatpush.bf16.msra.mxu0 %v466
    %484 = vmatpush.bf16.msra.mxu0 %v465
    %485 = vmatpush.bf16.msra.mxu0 %v464
    %486 = vmatpush.bf16.msra.mxu0 %v463
    %487 = vmatmul.bf16.gmra.mxu0 %v427
    %v488 = vpop.f32.mrf.mxu0
    %v489 = vadd.f32 %v429, %v488
    %v490 = vpop.f32.mrf.mxu0
    %491 = vdwg.mxu0
    %v492 = vld [vmem:[%s35] sm:$0x1]
    %v493 = vld [vmem:[%s37] sm:$0x1]
    %v494 = vsel %vm340, %v489, 0.0
    %495 = vadd.xlane.f32.xlu0 %v494
    %v496 = vpop.xlane.xlu0 %495
    %v497 = vmul.f32 %v496, %v350
    %v498 = vsub.f32 %v489, %v497
    %v499 = vmul.f32 %v498, %v498
    %v500 = vsel %vm340, %v499, 0.0
    %501 = vadd.xlane.f32.xlu0 %v500
    %v502 = vpop.xlane.xlu0 %501
    %v503 = vmul.f32 %v502, %v350
    %v504 = vadd.f32 %v503, 1e-05
    %v505 = vrsqrt.pop %v504
    %v506 = vmul.f32 %v505, %v504
    %v507 = vmul.f32 %v506, %v505
    %v508 = vmul.f32 0.5, %v507
    %v509 = vsub.f32 1.5, %v508
    %v510 = vmul.f32 %v505, %v509
    %vm511 = vweird.f32 %v504
    %vm512 = vweird.f32 %v505
    %vm513 = vmor %vm511, %vm512
    %v514 = vsel %vm513, %v505, %v510
    %v515 = vmul.f32 %v498, %v514
    %v517 = vperm.slane %v492, 0
    %v519 = vmul.f32 %v515, %v517
    %v521 = vperm.slane %v493, 0
    %v523 = vadd.f32 %v519, %v521
    %vm524 = vcmp.ge.f32.partialorder %v523, 0.0
    %v525 = vmul.f32 %v523, 0.02
    %v526 = vsel %vm524, %v523, %v525
    %v527 = vld [vmem:[%s39] sm:$0xf]
    %v528 = vld [vmem:[%s39 + $0x4] sm:$0xf]
    %v529 = vld [vmem:[%s41] sm:$0x1]
    %v530 = vpack.c.bf16 %v526, %v526
    %v532 = vperm.slane %v529, 0
    %v536 = vunpack.c.l.b16 %v527
    %v537 = vunpack.c.l.b16 %v528
    %v538 = vpack.c.b16 %v537, %v536
    %v541 = vsel %vm340, %v530, 0
    %543 = vmatpush.bf16.msra.mxu0 0
    %544 = vmatpush.bf16.msra.mxu0 0
    %545 = vmatpush.bf16.msra.mxu0 0
    %546 = vmatpush.bf16.msra.mxu0 0
    %547 = vmatpush.bf16.msra.mxu0 0
    %548 = vmatpush.bf16.msra.mxu0 0
    %549 = vmatpush.bf16.msra.mxu0 0
    %550 = vmatpush.bf16.msra.mxu0 %v538
    %551 = vmatmul.bf16.gmra.mxu0 %v541
    %v552 = vpop.f32.mrf.mxu0
    %v553 = vadd.f32 %v532, %v552
    %v554 = vpop.f32.mrf.mxu0
    %555 = vdwg.mxu0
    %v556 = vld [vmem:[%s43] sm:$0x1]
    %v557 = vld [vmem:[%s45] sm:$0x1]
    %v558 = vsel %vm146, %v553, 0.0
    %559 = vadd.xlane.f32.xlu0 %v558
    %v560 = vpop.xlane.xlu0 %559
    %v561 = vmul.f32 %v560, %v270
    %v562 = vsub.f32 %v553, %v561
    %v563 = vmul.f32 %v562, %v562
    %v564 = vsel %vm146, %v563, 0.0
    %565 = vadd.xlane.f32.xlu0 %v564
    %v566 = vpop.xlane.xlu0 %565
    %v567 = vmul.f32 %v566, %v270
    %v568 = vadd.f32 %v567, 1e-05
    %v569 = vrsqrt.pop %v568
    %v570 = vmul.f32 %v569, %v568
    %v571 = vmul.f32 %v570, %v569
    %v572 = vmul.f32 0.5, %v571
    %v573 = vsub.f32 1.5, %v572
    %v574 = vmul.f32 %v569, %v573
    %vm575 = vweird.f32 %v568
    %vm576 = vweird.f32 %v569
    %vm577 = vmor %vm575, %vm576
    %v578 = vsel %vm577, %v569, %v574
    %v579 = vmul.f32 %v562, %v578
    %v581 = vperm.slane %v556, 0
    %v583 = vmul.f32 %v579, %v581
    %v585 = vperm.slane %v557, 0
    %v587 = vadd.f32 %v583, %v585
    %vm588 = vcmp.ge.f32.partialorder %v587, 0.0
    %v589 = vmul.f32 %v587, 0.02
    %v590 = vsel %vm588, %v587, %v589
    %v591 = vld [vmem:[%s47] sm:$0xf]
    %v592 = vld [vmem:[%s47 + $0x4] sm:$0xf]
    %v593 = vld [vmem:[%s47 + $0x8] sm:$0xf]
    %v594 = vld [vmem:[%s47 + $0xc] sm:$0xf]
    %v595 = vld [vmem:[%s49] sm:$0x1]
    %v596 = vpack.c.bf16 %v590, %v590
    %v598 = vperm.slane %v595, 0
    %v604 = vunpack.c.l.b16 %v591
    %v605 = vunpack.c.l.b16 %v592
    %v606 = vunpack.c.l.b16 %v593
    %v607 = vunpack.c.l.b16 %v594
    %v608 = vpack.c.b16 %v605, %v604
    %v609 = vpack.c.b16 %v607, %v606
    %v613 = vsel %vm146, %v596, 0
    %615 = vmatpush.bf16.msra.mxu0 0
    %616 = vmatpush.bf16.msra.mxu0 0
    %617 = vmatpush.bf16.msra.mxu0 0
    %618 = vmatpush.bf16.msra.mxu0 0
    %619 = vmatpush.bf16.msra.mxu0 0
    %620 = vmatpush.bf16.msra.mxu0 0
    %621 = vmatpush.bf16.msra.mxu0 %v609
    %622 = vmatpush.bf16.msra.mxu0 %v608
    %623 = vmatmul.bf16.gmra.mxu0 %v613
    %v624 = vpop.f32.mrf.mxu0
    %v625 = vadd.f32 %v598, %v624
    %v626 = vpop.f32.mrf.mxu0
    %627 = vdwg.mxu0
    %v628 = vld [vmem:[%s51] sm:$0x1]
    %v629 = vld [vmem:[%s53] sm:$0x1]
    %v630 = vsel %vm165, %v625, 0.0
    %631 = vadd.xlane.f32.xlu0 %v630
    %v632 = vpop.xlane.xlu0 %631
    %v633 = vmul.f32 %v632, %v175
    %v634 = vsub.f32 %v625, %v633
    %v635 = vmul.f32 %v634, %v634
    %v636 = vsel %vm165, %v635, 0.0
    %637 = vadd.xlane.f32.xlu0 %v636
    %v638 = vpop.xlane.xlu0 %637
    %v639 = vmul.f32 %v638, %v175
    %v640 = vadd.f32 %v639, 1e-05
    %v641 = vrsqrt.pop %v640
    %v642 = vmul.f32 %v641, %v640
    %v643 = vmul.f32 %v642, %v641
    %v644 = vmul.f32 0.5, %v643
    %v645 = vsub.f32 1.5, %v644
    %v646 = vmul.f32 %v641, %v645
    %vm647 = vweird.f32 %v640
    %vm648 = vweird.f32 %v641
    %vm649 = vmor %vm647, %vm648
    %v650 = vsel %vm649, %v641, %v646
    %v651 = vmul.f32 %v634, %v650
    %v653 = vperm.slane %v628, 0
    %v655 = vmul.f32 %v651, %v653
    %v657 = vperm.slane %v629, 0
    %v659 = vadd.f32 %v655, %v657
    %vm660 = vcmp.ge.f32.partialorder %v659, 0.0
    %v661 = vmul.f32 %v659, 0.02
    %v662 = vsel %vm660, %v659, %v661
    %v663 = vld [vmem:[%s55] sm:$0xf]
    %v664 = vld [vmem:[%s55 + $0x4] sm:$0xf]
    %v665 = vld [vmem:[%s55 + $0x8] sm:$0xf]
    %v666 = vld [vmem:[%s55 + $0xc] sm:$0xf]
    %v667 = vld [vmem:[%s55 + $0x10] sm:$0xf]
    %v668 = vld [vmem:[%s55 + $0x14] sm:$0xf]
    %v669 = vld [vmem:[%s55 + $0x18] sm:$0xf]
    %v670 = vld [vmem:[%s55 + $0x1c] sm:$0xf]
    %v671 = vld [vmem:[%s57] sm:$0x1]
    %v672 = vpack.c.bf16 %v662, %v662
    %v674 = vperm.slane %v671, 0
    %v684 = vunpack.c.l.b16 %v663
    %v685 = vunpack.c.l.b16 %v664
    %v686 = vunpack.c.l.b16 %v665
    %v687 = vunpack.c.l.b16 %v666
    %v688 = vunpack.c.l.b16 %v667
    %v689 = vunpack.c.l.b16 %v668
    %v690 = vunpack.c.l.b16 %v669
    %v691 = vunpack.c.l.b16 %v670
    %v692 = vpack.c.b16 %v685, %v684
    %v693 = vpack.c.b16 %v687, %v686
    %v694 = vpack.c.b16 %v689, %v688
    %v695 = vpack.c.b16 %v691, %v690
    %v701 = vsel %vm165, %v672, 0
    %703 = vmatpush.bf16.msra.mxu0 0
    %704 = vmatpush.bf16.msra.mxu0 0
    %705 = vmatpush.bf16.msra.mxu0 0
    %706 = vmatpush.bf16.msra.mxu0 0
    %707 = vmatpush.bf16.msra.mxu0 %v695
    %708 = vmatpush.bf16.msra.mxu0 %v694
    %709 = vmatpush.bf16.msra.mxu0 %v693
    %710 = vmatpush.bf16.msra.mxu0 %v692
    %711 = vmatmul.bf16.gmra.mxu0 %v701
    %v712 = vpop.f32.mrf.mxu0
    %v713 = vadd.f32 %v674, %v712
    %v714 = vpop.f32.mrf.mxu0
    %715 = vdwg.mxu0
    %v716 = vsel %vm146, %v713, -inf
    %717 = vmax.xlane.f32.xlu0 %v716
    %v718 = vpop.xlane.xlu0 %717
    %v719 = vsub.f32 %v713, %v718
    %v720 = vmul.f32 %v719, 1.442695
    %v721 = vpow.pop %v720
    %v722 = vsel %vm146, %v721, 0.0
    %723 = vadd.xlane.f32.xlu0 %v722
    %v724 = vpop.xlane.xlu0 %723
    %v725 = vrcp.pop %v724
    %v726 = vmul.f32 %v721, %v725
    %727 = vst.msk [vmem:[#allocation2] sm:$0xff] %vm146, %v726
    // Predicated region
    $region118: #{tpu_custom_call.1} parent=1 // pred_check
      _
    $region119: #{tpu_custom_call.1} parent=1 // pred_check_branch
      %729 = sbr.rel (0) target = $region121
    $region120: #{tpu_custom_call.1} parent=1 // pred_region
      %731 = vsyncadd [#allocation3], 0
      %s733 = sshll.u32 [#allocation2], 4
      %s734 = int_to_ptr.vmem [resolvable:$true] %s733
      %s735 = sshll.u32 %s59, 4
      %s736 = int_to_ptr.hbm [resolvable:$true] %s735
      %738 = dma.vmem_to_hbm [thread:$0]  %s734, 128, %s736, [#allocation3]
    $region121: #{tpu_custom_call.1} parent=1 // pred_fallthru
      _
    // Predicated region
    $region122: #{tpu_custom_call.1} parent=1 // pred_check
      _
    $region123: #{tpu_custom_call.1} parent=1 // pred_check_branch
      %740 = sbr.rel (0) target = $region125
    $region124: #{tpu_custom_call.1} parent=1 // pred_region
      %742 = dma.done [#allocation3], 128
    $region125: #{tpu_custom_call.1} parent=1 // pred_fallthru
      _
    %743 = vsyncpa [#allocation3], 1

</llo_original>
